<compile_context>
chip_gen: v7x
topology: tpu7x:2x2x1
jax: 0.10.0
libtpu: 0.0.40
codegen_flags: <defaults>
</compile_context>

<pallas_src>
import functools
import math

import jax
import jax.numpy as jnp
import numpy as np
from jax import lax
from jax.experimental import pallas as pl
from jax.experimental.pallas import tpu as pltpu


_TM_CANDIDATES = (8192, 4096, 2048, 1024, 512, 256, 128, 64, 32, 16, 8)
_MAX_CHUNK_ROWS = 512          # rows per in-kernel compute sub-chunk
_FALLBACK_VMEM_BYTES = 64 * 1024 * 1024   # assume v7x-sized VMEM if query fails


def _round_up(x, m):
    return ((x + m - 1) // m) * m


def _sublane(dtype):
    """Rows per sublane-packed vreg group for this dtype (8 f32 / 16 bf16 / 32 int8)."""
    return max(8, 32 // jnp.dtype(dtype).itemsize)


@functools.lru_cache(maxsize=1)
def _vmem_budget_and_limit():
    """Generation-aware (budget, compiler-limit) in bytes."""
    try:
        cap = int(pltpu.get_tpu_info().vmem_capacity_bytes)
    except Exception:  # info query only; fall back to the most conservative size
        cap = _FALLBACK_VMEM_BYTES
    limit = min(int(cap * 0.85), cap - (4 << 20))   # headroom for compiler scratch
    budget = int(limit * 0.85)                      # headroom for pipeline bookkeeping
    return budget, limit


@functools.lru_cache(maxsize=1)
def _single_buffer_supported():
    """One-time capability probe for pipeline_mode=pl.Buffered(1) on grid-invariant blocks."""
    if not hasattr(pl, "Buffered"):
        return False

    def _probe_kernel(x_ref, w_ref, o_ref):
        o_ref[...] = x_ref[...] + w_ref[...]

    try:
        probe = pl.pallas_call(
            _probe_kernel,
            out_shape=jax.ShapeDtypeStruct((8, 128), jnp.float32),
            grid_spec=pltpu.PrefetchScalarGridSpec(
                num_scalar_prefetch=0,
                grid=(1,),
                in_specs=[
                    pl.BlockSpec((8, 128), lambda i: (0, 0)),
                    pl.BlockSpec((8, 128), lambda i: (0, 0),
                                 pipeline_mode=pl.Buffered(1)),
                ],
                out_specs=pl.BlockSpec((8, 128), lambda i: (0, 0)),
            ),
        )
        jax.block_until_ready(probe(jnp.zeros((8, 128), jnp.float32),
                                    jnp.zeros((8, 128), jnp.float32)))
        return True
    except Exception:  # capability probe only; real builds never use a broad except
        return False


def _make_kernel(chunk_rows, n_chunks, approx_gelu):
    inv_sqrt2 = np.float32(1.0 / math.sqrt(2.0))

    def _gelu(h):
        if approx_gelu:
            # tanh form -> EUP (free bundle slot); slightly different numerics.
            return jax.nn.gelu(h, approximate=True)
        return 0.5 * h * (1.0 + lax.erf(h * inv_sqrt2))

    def kernel(x_ref, w1_ref, b1_ref, w2_ref, b2_ref, o_ref):
        # Hoist grid-invariant weight/bias loads out of the sub-chunk loop.
        w1 = w1_ref[...]
        w2 = w2_ref[...]
        b1 = b1_ref[...]
        b2 = b2_ref[...]

        def compute(x):
            # fc1 (Conv1d k=1 == per-point linear): MXU-native dtypes, f32 accumulate.
            h = jnp.dot(x.astype(w1.dtype), w1,
                        preferred_element_type=jnp.float32) + b1
            h = _gelu(h)
            # fc2: cast activations to the weight dtype (no-op for f32 weights).
            y = jnp.dot(h.astype(w2.dtype), w2,
                        preferred_element_type=jnp.float32) + b2
            return y

        if n_chunks == 1:
            o_ref[...] = compute(x_ref[...]).astype(o_ref.dtype)
        else:
            # Large DMA tile, bounded f32 intermediates: sub-chunk the compute.
            def body(c, carry):
                r = pl.multiple_of(c * chunk_rows, chunk_rows)
                x = x_ref[pl.ds(r, chunk_rows), :]
                o_ref[pl.ds(r, chunk_rows), :] = compute(x).astype(o_ref.dtype)
                return carry

            lax.fori_loop(0, n_chunks, body, 0)

    return kernel


def _choose_tile_rows(M_aligned, c_in_p, h_p, c_out_p, act_bytes, w_bytes,
                      vmem_budget, sublane, single_buffer):
    """Largest candidate row tile whose lane-padded working set fits the VMEM budget,
    capped so the grid keeps >=2 (ideally >=4) steps, preferring tiles that divide the
    aligned row count (no row padding)."""
    w_copies = 1 if single_buffer else 2
    weight_bytes = w_copies * ((c_in_p * h_p + h_p * c_out_p) * w_bytes
                               + (h_p + c_out_p) * 4)

    def fits(tm):
        chunk = min(tm, _MAX_CHUNK_ROWS)
        tile_bytes = (2 * tm * c_in_p * act_bytes        # double-buffered x tile (lane-padded)
                      + 2 * tm * c_out_p * act_bytes     # double-buffered out tile
                      + chunk * h_p * 4                  # f32 hidden / GELU intermediate
                      + chunk * c_out_p * 4)             # f32 result before cast
        return weight_bytes + tile_bytes <= vmem_budget

    # Keep >=4 grid steps when there is plenty of work (two v7x TCs + pipelining),
    # >=2 steps for mid-size inputs, single tile for tiny inputs.
    if M_aligned >= 4 * 256:
        cap = M_aligned // 4
    elif M_aligned >= 2 * sublane:
        cap = max(sublane, M_aligned // 2)
    else:
        cap = M_aligned

    fitting = [tm for tm in _TM_CANDIDATES
               if tm % sublane == 0 and tm <= cap and tm <= M_aligned and fits(tm)]
    if not fitting:
        # TODO(synk): for weights approaching the VMEM budget (very large C_in/H),
        # add a K-reduction grid axis with a VMEM f32 accumulator instead of holding
        # full W1/W2 resident.
        return sublane
    divisors = [tm for tm in fitting if M_aligned % tm == 0]
    return divisors[0] if divisors else fitting[0]


def _build_call(m_pad, tm, chunk, c_in, h_p, c_out_p, out_dtype,
                single_buffer_weights, approx_gelu, vmem_limit, cost):
    kernel = _make_kernel(chunk, tm // chunk, approx_gelu)

    def const_spec(shape):
        # Grid-invariant blocks: single VMEM buffer (fetched once) when supported.
        if single_buffer_weights:
            return pl.BlockSpec(shape, lambda i: (0, 0),
                                pipeline_mode=pl.Buffered(1))
        return pl.BlockSpec(shape, lambda i: (0, 0))

    return pl.pallas_call(
        kernel,
        out_shape=jax.ShapeDtypeStruct((m_pad, c_out_p), out_dtype),
        grid_spec=pltpu.PrefetchScalarGridSpec(
            num_scalar_prefetch=0,
            grid=(m_pad // tm,),
            in_specs=[
                pl.BlockSpec((tm, c_in), lambda i: (i, 0)),   # x row tile
                const_spec((c_in, h_p)),                      # W1 (full, grid-invariant)
                const_spec((1, h_p)),                         # b1 (f32)
                const_spec((h_p, c_out_p)),                   # W2 (full, grid-invariant)
                const_spec((1, c_out_p)),                     # b2 (f32)
            ],
            out_specs=pl.BlockSpec((tm, c_out_p), lambda i: (i, 0)),
        ),
        compiler_params=pltpu.CompilerParams(
            dimension_semantics=("parallel",),
            vmem_limit_bytes=vmem_limit,
        ),
        cost_estimate=cost,
    )


def shared_mlp(x, w1, b1, w2, b2, *, tile_rows=None, use_bf16_matmul=False,
               approximate_gelu=False):
    """SharedMlp forward. x: (B, N, C_in) channel-last. Returns (B, N, C_out).

    w1: (C_in, H)   -- transpose of PyTorch fc1 Conv1d weight squeezed to (H, C_in)
    b1: (H,)
    w2: (H, C_out)  -- transpose of PyTorch fc2 Conv1d weight squeezed to (C_out, H)
    b2: (C_out,)
    use_bf16_matmul: opt-in bf16 MXU path (changes numerics vs the f32 reference).
    approximate_gelu: opt-in tanh GELU (EUP-friendly); default exact erf like nn.GELU().
    """
    B, N, C_in = x.shape
    H = w1.shape[1]
    C_out = w2.shape[1]

    # One MXU operand dtype, converted ONCE here (never per grid iteration).
    if use_bf16_matmul and x.dtype == jnp.float32:
        mxu_dtype = jnp.bfloat16
    else:
        mxu_dtype = x.dtype
    if w1.dtype != mxu_dtype:
        w1 = w1.astype(mxu_dtype)
    if w2.dtype != mxu_dtype:
        w2 = w2.astype(mxu_dtype)

    # Lane-dense padding of hidden / output channel dims (multiples of 128 ->
    # unmasked stores, full-lane matmul tiles). C_in left unpadded on purpose.
    H_p = _round_up(H, 128)
    C_out_p = _round_up(C_out, 128)
    if H_p != H:
        w1 = jnp.pad(w1, ((0, 0), (0, H_p - H)))
        w2 = jnp.pad(w2, ((0, H_p - H), (0, 0)))
        b1 = jnp.pad(b1, (0, H_p - H))
    if C_out_p != C_out:
        w2 = jnp.pad(w2, ((0, 0), (0, C_out_p - C_out)))
        b2 = jnp.pad(b2, (0, C_out_p - C_out))
    b1_2d = b1.reshape(1, H_p).astype(jnp.float32)
    b2_2d = b2.reshape(1, C_out_p).astype(jnp.float32)

    M = B * N
    x2d = x.reshape(M, C_in)

    sublane = _sublane(x.dtype)
    M_aligned = _round_up(M, sublane)
    C_in_p = _round_up(C_in, 128)           # lane-padded VMEM footprint of the x tile

    single_buffer = _single_buffer_supported()
    vmem_budget, vmem_limit = _vmem_budget_and_limit()

    if tile_rows is None:
        tm = _choose_tile_rows(M_aligned, C_in_p, H_p, C_out_p,
                               x.dtype.itemsize, w1.dtype.itemsize,
                               vmem_budget, sublane, single_buffer)
    else:
        tm = max(sublane, _round_up(min(tile_rows, M_aligned), sublane))

    # Sub-chunk rows for the in-kernel compute loop (must divide tm, sublane-aligned).
    chunk = tm
    while chunk > _MAX_CHUNK_ROWS and chunk % 2 == 0 and (chunk // 2) % sublane == 0:
        chunk //= 2

    M_pad = _round_up(M, tm)
    if M_pad != M:       # only materialize a padded copy of x when actually needed
        x2d = jnp.pad(x2d, ((0, M_pad - M), (0, 0)))

    cost = pl.CostEstimate(
        flops=2 * M_pad * (C_in * H_p + H_p * C_out_p),
        transcendentals=M_pad * H_p,
        bytes_accessed=(M_pad * C_in * x.dtype.itemsize
                        + M_pad * C_out_p * x.dtype.itemsize
                        + (C_in * H_p + H_p * C_out_p) * w1.dtype.itemsize
                        + (H_p + C_out_p) * 4),
    )

    call = _build_call(M_pad, tm, chunk, C_in, H_p, C_out_p, x.dtype,
                       single_buffer, approximate_gelu, vmem_limit, cost)
    out2d = call(x2d, w1, b1_2d, w2, b2_2d)

    # Skip the (HBM read+write) slice entirely when no padding was applied.
    if M_pad != M or C_out_p != C_out:
        out2d = out2d[:M, :C_out]
    return out2d.reshape(B, N, C_out)


def init_shared_mlp_params(key, in_features, hidden_features, out_features,
                           dtype=jnp.float32):
    """Deterministic init mimicking PyTorch Conv1d default (kaiming-uniform-ish)."""
    k1, k2, k3, k4 = jax.random.split(key, 4)
    bound1 = 1.0 / math.sqrt(in_features)      # fan_in of fc1 (kernel_size=1)
    bound2 = 1.0 / math.sqrt(hidden_features)  # fan_in of fc2
    w1 = jax.random.uniform(k1, (in_features, hidden_features), dtype,
                            minval=-bound1, maxval=bound1)
    b1 = jax.random.uniform(k2, (hidden_features,), dtype,
                            minval=-bound1, maxval=bound1)
    w2 = jax.random.uniform(k3, (hidden_features, out_features), dtype,
                            minval=-bound2, maxval=bound2)
    b2 = jax.random.uniform(k4, (out_features,), dtype,
                            minval=-bound2, maxval=bound2)
    return w1, b1, w2, b2


def shared_mlp_ref(x, w1, b1, w2, b2):
    """Pure-JAX reference of the PyTorch forward (channel_last=True, drop=0)."""
    h = jnp.einsum("bnc,ch->bnh", x, w1) + b1
    h = 0.5 * h * (1.0 + lax.erf(h / jnp.sqrt(2.0)))
    return jnp.einsum("bnh,ho->bno", h, w2) + b2


if __name__ == "__main__":
    B, N = 2, 16          # batch, number of points
    C_in, Hid, C_out = 16, 32, 16

    key = jax.random.PRNGKey(0)
    kx, kp = jax.random.split(key)
    x = jax.random.normal(kx, (B, N, C_in), dtype=jnp.float32)
    w1, b1, w2, b2 = init_shared_mlp_params(kp, C_in, Hid, C_out)

    out = shared_mlp(x, w1, b1, w2, b2)
    out = jax.block_until_ready(out)

    ref = shared_mlp_ref(x, w1, b1, w2, b2)
    np.testing.assert_allclose(np.asarray(out), np.asarray(ref),
                               rtol=1e-5, atol=1e-5)

    print("KERNEL_OK")
</pallas_src>

<mosaic_0001>
module attributes {stable_mosaic.version = 11 : i64} {
  func.func @_probe_kernel(%arg0: i32, %arg1: memref<8x128xf32, #tpu.memory_space<vmem>>, %arg2: memref<8x128xf32, #tpu.memory_space<vmem>>, %arg3: memref<8x128xf32, #tpu.memory_space<vmem>>) attributes {dimension_semantics = [#tpu.dimension_semantics<arbitrary>], iteration_bounds = array<i64: 1>, scalar_prefetch = 0 : i64, scratch_operands = 0 : i64, tpu.core_type = #tpu.core_type<tc>, window_params = [{pipeline_mode = #tpu.pipeline_mode<synchronous>, transform_indices = @transform_0, window_bounds = array<i64: 8, 128>}, {pipeline_mode = #tpu.pipeline_mode<synchronous>, transform_indices = @transform_1, window_bounds = array<i64: 8, 128>}, {pipeline_mode = #tpu.pipeline_mode<synchronous>, transform_indices = @transform_2, window_bounds = array<i64: 8, 128>}]} {
    %c0 = arith.constant 0 : index
    %c0_0 = arith.constant 0 : index
    %0 = vector.load %arg1[%c0, %c0_0] : memref<8x128xf32, #tpu.memory_space<vmem>>, vector<8x128xf32>
    %c0_1 = arith.constant 0 : index
    %c0_2 = arith.constant 0 : index
    %1 = vector.load %arg2[%c0_1, %c0_2] : memref<8x128xf32, #tpu.memory_space<vmem>>, vector<8x128xf32>
    %2 = arith.addf %0, %1 : vector<8x128xf32>
    %c0_3 = arith.constant 0 : index
    %c0_4 = arith.constant 0 : index
    %3 = vector.load %arg3[%c0_3, %c0_4] : memref<8x128xf32, #tpu.memory_space<vmem>>, vector<8x128xf32>
    tpu.vector_store %arg3[%c0_3, %c0_4], %2 {strides = array<i32>} : memref<8x128xf32, #tpu.memory_space<vmem>>, vector<8x128xf32>,
    return
  }
  func.func @transform_0(%arg0: i32) -> (i32, i32) {
    %c0_i32 = arith.constant 0 : i32
    %c0_i32_0 = arith.constant 0 : i32
    %c0_i32_1 = arith.constant 0 : i32
    return %c0_i32, %c0_i32_0 : i32, i32
  }
  func.func @transform_1(%arg0: i32) -> (i32, i32) {
    %c0_i32 = arith.constant 0 : i32
    %c0_i32_0 = arith.constant 0 : i32
    %c0_i32_1 = arith.constant 0 : i32
    return %c0_i32, %c0_i32_0 : i32, i32
  }
  func.func @transform_2(%arg0: i32) -> (i32, i32) {
    %c0_i32 = arith.constant 0 : i32
    %c0_i32_0 = arith.constant 0 : i32
    %c0_i32_1 = arith.constant 0 : i32
    return %c0_i32, %c0_i32_0 : i32, i32
  }
}

module attributes {stable_mosaic.version = 11 : i64} {
  func.func @kernel(%arg0: i32, %arg1: memref<16x16xf32, #tpu.memory_space<vmem>>, %arg2: memref<16x128xf32, #tpu.memory_space<vmem>>, %arg3: memref<1x128xf32, #tpu.memory_space<vmem>>, %arg4: memref<128x128xf32, #tpu.memory_space<vmem>>, %arg5: memref<1x128xf32, #tpu.memory_space<vmem>>, %arg6: memref<16x128xf32, #tpu.memory_space<vmem>>) attributes {dimension_semantics = [#tpu.dimension_semantics<parallel>], iteration_bounds = array<i64: 2>, scalar_prefetch = 0 : i64, scratch_operands = 0 : i64, tpu.core_type = #tpu.core_type<tc>, window_params = [{transform_indices = @transform_0, window_bounds = array<i64: 16, 16>}, {pipeline_mode = #tpu.pipeline_mode<synchronous>, transform_indices = @transform_1, window_bounds = array<i64: 16, 128>}, {pipeline_mode = #tpu.pipeline_mode<synchronous>, transform_indices = @transform_2, window_bounds = array<i64: 1, 128>}, {pipeline_mode = #tpu.pipeline_mode<synchronous>, transform_indices = @transform_3, window_bounds = array<i64: 128, 128>}, {pipeline_mode = #tpu.pipeline_mode<synchronous>, transform_indices = @transform_4, window_bounds = array<i64: 1, 128>}, {transform_indices = @transform_5, window_bounds = array<i64: 16, 128>}]} {
    %c0 = arith.constant 0 : index
    %c0_0 = arith.constant 0 : index
    %0 = vector.load %arg2[%c0, %c0_0] : memref<16x128xf32, #tpu.memory_space<vmem>>, vector<16x128xf32>
    %c0_1 = arith.constant 0 : index
    %c0_2 = arith.constant 0 : index
    %1 = vector.load %arg4[%c0_1, %c0_2] : memref<128x128xf32, #tpu.memory_space<vmem>>, vector<128x128xf32>
    %c0_3 = arith.constant 0 : index
    %c0_4 = arith.constant 0 : index
    %2 = vector.load %arg3[%c0_3, %c0_4] : memref<1x128xf32, #tpu.memory_space<vmem>>, vector<1x128xf32>
    %c0_5 = arith.constant 0 : index
    %c0_6 = arith.constant 0 : index
    %3 = vector.load %arg5[%c0_5, %c0_6] : memref<1x128xf32, #tpu.memory_space<vmem>>, vector<1x128xf32>
    %c0_7 = arith.constant 0 : index
    %c0_8 = arith.constant 0 : index
    %4 = vector.load %arg1[%c0_7, %c0_8] : memref<16x16xf32, #tpu.memory_space<vmem>>, vector<16x16xf32>
    %cst = arith.constant dense<0.000000e+00> : vector<16x128xf32>
    %5 = tpu.matmul %4, %0, %cst {dimension_numbers = #tpu.dot_dimension_numbers<[1], [0], [0], [1], [0, 0, 1, 1], [], []>} : vector<16x16xf32>, vector<16x128xf32>, vector<16x128xf32> -> vector<16x128xf32>
    %6 = vector.broadcast %2 : vector<1x128xf32> to vector<16x128xf32>
    %7 = arith.addf %5, %6 : vector<16x128xf32>
    %cst_9 = arith.constant 5.000000e-01 : f32
    %8 = vector.broadcast %cst_9 : f32 to vector<16x128xf32>
    %9 = arith.mulf %8, %7 : vector<16x128xf32>
    %cst_10 = arith.constant 0.707106769 : f32
    %10 = vector.broadcast %cst_10 : f32 to vector<16x128xf32>
    %11 = arith.mulf %7, %10 : vector<16x128xf32>
    %12 = math.erf %11 : vector<16x128xf32>
    %cst_11 = arith.constant 1.000000e+00 : f32
    %13 = vector.broadcast %cst_11 : f32 to vector<16x128xf32>
    %14 = arith.addf %13, %12 : vector<16x128xf32>
    %15 = arith.mulf %9, %14 : vector<16x128xf32>
    %cst_12 = arith.constant dense<0.000000e+00> : vector<16x128xf32>
    %16 = tpu.matmul %15, %1, %cst_12 {dimension_numbers = #tpu.dot_dimension_numbers<[1], [0], [0], [1], [0, 0, 1, 1], [], []>} : vector<16x128xf32>, vector<128x128xf32>, vector<16x128xf32> -> vector<16x128xf32>
    %17 = vector.broadcast %3 : vector<1x128xf32> to vector<16x128xf32>
    %18 = arith.addf %16, %17 : vector<16x128xf32>
    %c0_13 = arith.constant 0 : index
    %c0_14 = arith.constant 0 : index
    %19 = vector.load %arg6[%c0_13, %c0_14] : memref<16x128xf32, #tpu.memory_space<vmem>>, vector<16x128xf32>
    tpu.vector_store %arg6[%c0_13, %c0_14], %18 {strides = array<i32>} : memref<16x128xf32, #tpu.memory_space<vmem>>, vector<16x128xf32>,
    return
  }
  func.func @transform_0(%arg0: i32) -> (i32, i32) {
    %c0_i32 = arith.constant 0 : i32
    %c0_i32_0 = arith.constant 0 : i32
    return %arg0, %c0_i32 : i32, i32
  }
  func.func @transform_1(%arg0: i32) -> (i32, i32) {
    %c0_i32 = arith.constant 0 : i32
    %c0_i32_0 = arith.constant 0 : i32
    %c0_i32_1 = arith.constant 0 : i32
    return %c0_i32, %c0_i32_0 : i32, i32
  }
  func.func @transform_2(%arg0: i32) -> (i32, i32) {
    %c0_i32 = arith.constant 0 : i32
    %c0_i32_0 = arith.constant 0 : i32
    %c0_i32_1 = arith.constant 0 : i32
    return %c0_i32, %c0_i32_0 : i32, i32
  }
  func.func @transform_3(%arg0: i32) -> (i32, i32) {
    %c0_i32 = arith.constant 0 : i32
    %c0_i32_0 = arith.constant 0 : i32
    %c0_i32_1 = arith.constant 0 : i32
    return %c0_i32, %c0_i32_0 : i32, i32
  }
  func.func @transform_4(%arg0: i32) -> (i32, i32) {
    %c0_i32 = arith.constant 0 : i32
    %c0_i32_0 = arith.constant 0 : i32
    %c0_i32_1 = arith.constant 0 : i32
    return %c0_i32, %c0_i32_0 : i32, i32
  }
  func.func @transform_5(%arg0: i32) -> (i32, i32) {
    %c0_i32 = arith.constant 0 : i32
    %c0_i32_0 = arith.constant 0 : i32
    return %arg0, %c0_i32 : i32, i32
  }
}

</mosaic_0001>

<llo_original>
// kernel: tpu_custom_call.1
$region0: #{tpu_custom_call.1}
  #allocation0 [shape = 'u32[]', space=smem, size = 0x4, offset = 0x4, fixed_abs, tag = 'smem constant byte address 0x4 - core index']
  #allocation1 [shape = 'u32[144,128]{1,0:T(1,128)}', space=vmem, size = 0x12000, scoped, tag = 'internal scratch']
  %s0 = inlined_call_operand.hbm [shape: f32[8,128], index: 0, kind: input, shape index: {}]
  %s1 = inlined_call_operand.hbm [shape: f32[8,128], index: 1, kind: input, shape index: {}]
  %s2 = inlined_call_operand.hbm [shape: f32[8,128], index: 2, kind: output, shape index: {}]
  %s3 = sld [smem:[#allocation0]]
  $region26: #{tpu_custom_call.1} parent=0
    _
  %s5 = ssub.s32 1, %s3
  %s6 = scalar_select 0, %s5, %s3
  $region1: #{tpu_custom_call.1} parent=0
    #allocation2 [shape = 'u8[4096]{0}', space=vmem, size = 0x1000, scoped, tag = 'input window, operand 0, single buffered']
    #allocation3 [shape = 's32[1]{0}', space=sflag, size = 0x4, scoped, tag = 'scoped memory for tpu_custom_call.1']
    #allocation4 [shape = 's32[1]{0}', space=sflag, size = 0x4, scoped, tag = 'scoped memory for tpu_custom_call.1']
    #allocation5 [shape = 'u8[4096]{0}', space=vmem, size = 0x1000, scoped, tag = 'input window, operand 1, single buffered']
    #allocation6 [shape = 's32[1]{0}', space=sflag, size = 0x4, scoped, tag = 'scoped memory for tpu_custom_call.1']
    #allocation7 [shape = 'u8[4096]{0}', space=vmem, size = 0x1000, scoped, tag = 'output window, operand 0, single buffered']
    %7 = vsyncpa [#allocation3], 0
    %8 = vsyncpa [#allocation6], 0
    %9 = vsyncpa [#allocation4], 0
    // Predicated region
    $region2: #{tpu_custom_call.1} parent=1 // pred_check
      _
    $region3: #{tpu_custom_call.1} parent=1 // pred_check_branch
      %11 = sbr.rel (0) target = $region5
    $region4: #{tpu_custom_call.1} parent=1 // pred_region
      %s13 = ssub.s32 128, 128
      %14 = vsyncadd [#allocation3], %s13
      %s16 = sshll.u32 [#allocation2], 4
      %s17 = int_to_ptr.vmem [resolvable:$true] %s16
      %19 = dma.hbm_to_vmem [thread:$0]  %s0, 128, %s17, [#allocation3]
    $region5: #{tpu_custom_call.1} parent=1 // pred_fallthru
      _
    // Predicated region
    $region6: #{tpu_custom_call.1} parent=1 // pred_check
      _
    $region7: #{tpu_custom_call.1} parent=1 // pred_check_branch
      %21 = sbr.rel (0) target = $region9
    $region8: #{tpu_custom_call.1} parent=1 // pred_region
      %s23 = ssub.s32 128, 128
      %24 = vsyncadd [#allocation6], %s23
      %s26 = sshll.u32 [#allocation5], 4
      %s27 = int_to_ptr.vmem [resolvable:$true] %s26
      %29 = dma.hbm_to_vmem [thread:$0]  %s1, 128, %s27, [#allocation6]
    $region9: #{tpu_custom_call.1} parent=1 // pred_fallthru
      _
    // Predicated region
    $region10: #{tpu_custom_call.1} parent=1 // pred_check
      _
    $region11: #{tpu_custom_call.1} parent=1 // pred_check_branch
      %31 = sbr.rel (0) target = $region13
    $region12: #{tpu_custom_call.1} parent=1 // pred_region
      %32 = dma.done [#allocation3], 128
    $region13: #{tpu_custom_call.1} parent=1 // pred_fallthru
      _
    // Predicated region
    $region14: #{tpu_custom_call.1} parent=1 // pred_check
      _
    $region15: #{tpu_custom_call.1} parent=1 // pred_check_branch
      %34 = sbr.rel (0) target = $region17
    $region16: #{tpu_custom_call.1} parent=1 // pred_region
      %35 = dma.done [#allocation6], 128
    $region17: #{tpu_custom_call.1} parent=1 // pred_fallthru
      _
    %v36 = vld [vmem:[#allocation2] sm:$0xff]
    %v37 = vld [vmem:[#allocation5] sm:$0xff]
    %v38 = vadd.f32 %v36, %v37
    %39 = vst [vmem:[#allocation7] sm:$0xff] %v38
    // Predicated region
    $region18: #{tpu_custom_call.1} parent=1 // pred_check
      _
    $region19: #{tpu_custom_call.1} parent=1 // pred_check_branch
      %41 = sbr.rel (0) target = $region21
    $region20: #{tpu_custom_call.1} parent=1 // pred_region
      %s43 = ssub.s32 128, 128
      %44 = vsyncadd [#allocation4], %s43
      %s46 = sshll.u32 [#allocation7], 4
      %s47 = int_to_ptr.vmem [resolvable:$true] %s46
      %49 = dma.vmem_to_hbm [thread:$0]  %s47, 128, %s2, [#allocation4]
    $region21: #{tpu_custom_call.1} parent=1 // pred_fallthru
      _
    // Predicated region
    $region22: #{tpu_custom_call.1} parent=1 // pred_check
      _
    $region23: #{tpu_custom_call.1} parent=1 // pred_check_branch
      %51 = sbr.rel (0) target = $region25
    $region24: #{tpu_custom_call.1} parent=1 // pred_region
      %52 = dma.done [#allocation4], 128
    $region25: #{tpu_custom_call.1} parent=1 // pred_fallthru
      _
    %53 = vsyncpa [#allocation3], 1
    %54 = vsyncpa [#allocation6], 1
    %55 = vsyncpa [#allocation4], 1

// kernel: tpu_custom_call.1
$region0: #{tpu_custom_call.1}
  #allocation0 [shape = 'u32[]', space=smem, size = 0x4, offset = 0x4, fixed_abs, tag = 'smem constant byte address 0x4 - core index']
  #allocation1 [shape = 'u32[144,128]{1,0:T(1,128)}', space=vmem, size = 0x12000, scoped, tag = 'internal scratch']
  %s0 = inlined_call_operand.vmem [shape: f32[32,16], index: 0, kind: input, shape index: {}]
  %s1 = inlined_call_operand.vmem [shape: f32[16,128], index: 1, kind: input, shape index: {}]
  %s2 = inlined_call_operand.vmem [shape: f32[1,128], index: 2, kind: input, shape index: {}]
  %s3 = inlined_call_operand.hbm [shape: f32[128,128], index: 3, kind: input, shape index: {}]
  %s4 = inlined_call_operand.vmem [shape: f32[1,128], index: 4, kind: input, shape index: {}]
  %s5 = inlined_call_operand.hbm [shape: f32[32,128], index: 5, kind: output, shape index: {}]
  %s6 = sld [smem:[#allocation0]]
  $region57: #{tpu_custom_call.1} parent=0
    _
  %s8 = ssub.s32 1, %s6
  %s9 = scalar_select 0, %s8, %s6
  $region1: #{tpu_custom_call.1} parent=0
    #allocation2 [shape = 'u8[65536]{0}', space=vmem, size = 0x10000, scoped, tag = 'input window, operand 3, single buffered']
    #allocation3 [shape = 's32[2]{0}', space=sflag, size = 0x8, scoped, tag = 'scoped memory for tpu_custom_call.1']
    #allocation4 [shape = 's32[2]{0}', space=sflag, size = 0x8, scoped, tag = 'scoped memory for tpu_custom_call.1']
    #allocation5 [shape = 'u8[16384]{0}', space=vmem, size = 0x4000, scoped, tag = 'output window, operand 0']
    %10 = vsyncpa [#allocation3], 0
    %11 = vsyncpa [#allocation4], 0
    %s12 = scalar_lea.sflag [#allocation4], 1
    %13 = vsyncpa %s12, 0
    loop: start=0, step=1, limit=4
    $region2: #{tpu_custom_call.1} parent=1 // loop_pre_header
      _
    $region3: #{tpu_custom_call.1} parent=1 // loop_header
      %s15 = sphi 0, %s19
      %p16 = scmp.ge.s32.totalorder %s15, 4
      %s25 = sphi 0, %s27
      %s28 = sphi 0, %s25
      %s29 = sphi 0, %s28
      %s45 = sphi 0, %s29
      %s49 = sphi 0, %s49
      %s51 = sphi 0, %s49
      %s52 = sphi 0, %s51
      %s66 = sphi 0, %s52
      %s70 = sphi 0, %s70
      %s72 = sphi 0, %s70
      %s73 = sphi 0, %s72
      %s87 = sphi 0, %s73
      %s91 = sphi 0, %s91
      %s93 = sphi 0, %s91
      %s94 = sphi 0, %s93
      %s108 = sphi 0, %s94
      %s112 = sphi 0, %s112
      %s114 = sphi 0, %s112
      %s115 = sphi 0, %s114
      %s129 = sphi 0, %s115
      %s135 = sphi 0, %s137
      %s138 = sphi 0, %s135
      %s139 = sphi 0, %s138
      %s155 = sphi 0, %s139
    $region4: #{tpu_custom_call.1} parent=1 // loop_header_branch
      %18 = sbr.rel (%p16) target = $region8
    $region5: #{tpu_custom_call.1} parent=1 // loop_body
      %s20 = ssub.s32 %s15, 1
      %s21 = ssub.s32 %s15, 2
      %s22 = sadd.s32 %s15, 1
      %s23 = ssub.s32 %s15, %s22
      %p24 = scmp.eq.s32.totalorder %s23, 0
      %s26 = sadd.s32 %s25, 1
      %s27 = scalar_select %p24, %s25, %s26
      %p30 = pneg %p24
      %p31 = scmp.eq.s32.totalorder %s15, 1
      %p32 = por %p30, %p31
      %p33 = scmp.ne.s32.totalorder %s25, %s28
      %p34 = scmp.eq.s32.totalorder %s15, 0
      %p35 = por %p33, %p34
      %p36 = scmp.ne.s32.totalorder %s25, %s28
      %p37 = scmp.eq.s32.totalorder %s20, 1
      %p38 = por %p36, %p37
      %p39 = scmp.ne.s32.totalorder %s28, %s29
      %p40 = scmp.eq.s32.totalorder %s20, 0
      %p41 = por %p39, %p40
      %p42 = scmp.ne.s32.totalorder %s28, %s29
      %p43 = scmp.eq.s32.totalorder %s21, 1
      %p44 = por %p42, %p43
      %p46 = scmp.ne.s32.totalorder %s29, %s45
      %p47 = scmp.eq.s32.totalorder %s21, 0
      %p48 = por %p46, %p47
      %s50 = sadd.s32 %s49, 1
      %p53 = scmp.eq.s32.totalorder %s15, 1
      %p54 = scmp.ne.s32.totalorder %s49, %s51
      %p55 = scmp.eq.s32.totalorder %s15, 0
      %p56 = por %p54, %p55
      %p57 = scmp.ne.s32.totalorder %s49, %s51
      %p58 = scmp.eq.s32.totalorder %s20, 1
      %p59 = por %p57, %p58
      %p60 = scmp.ne.s32.totalorder %s51, %s52
      %p61 = scmp.eq.s32.totalorder %s20, 0
      %p62 = por %p60, %p61
      %p63 = scmp.ne.s32.totalorder %s51, %s52
      %p64 = scmp.eq.s32.totalorder %s21, 1
      %p65 = por %p63, %p64
      %p67 = scmp.ne.s32.totalorder %s52, %s66
      %p68 = scmp.eq.s32.totalorder %s21, 0
      %p69 = por %p67, %p68
      %s71 = sadd.s32 %s70, 1
      %p74 = scmp.eq.s32.totalorder %s15, 1
      %p75 = scmp.ne.s32.totalorder %s70, %s72
      %p76 = scmp.eq.s32.totalorder %s15, 0
      %p77 = por %p75, %p76
      %p78 = scmp.ne.s32.totalorder %s70, %s72
      %p79 = scmp.eq.s32.totalorder %s20, 1
      %p80 = por %p78, %p79
      %p81 = scmp.ne.s32.totalorder %s72, %s73
      %p82 = scmp.eq.s32.totalorder %s20, 0
      %p83 = por %p81, %p82
      %p84 = scmp.ne.s32.totalorder %s72, %s73
      %p85 = scmp.eq.s32.totalorder %s21, 1
      %p86 = por %p84, %p85
      %p88 = scmp.ne.s32.totalorder %s73, %s87
      %p89 = scmp.eq.s32.totalorder %s21, 0
      %p90 = por %p88, %p89
      %s92 = sadd.s32 %s91, 1
      %p95 = scmp.eq.s32.totalorder %s15, 1
      %p96 = scmp.ne.s32.totalorder %s91, %s93
      %p97 = scmp.eq.s32.totalorder %s15, 0
      %p98 = por %p96, %p97
      %p99 = scmp.ne.s32.totalorder %s91, %s93
      %p100 = scmp.eq.s32.totalorder %s20, 1
      %p101 = por %p99, %p100
      %p102 = scmp.ne.s32.totalorder %s93, %s94
      %p103 = scmp.eq.s32.totalorder %s20, 0
      %p104 = por %p102, %p103
      %p105 = scmp.ne.s32.totalorder %s93, %s94
      %p106 = scmp.eq.s32.totalorder %s21, 1
      %p107 = por %p105, %p106
      %p109 = scmp.ne.s32.totalorder %s94, %s108
      %p110 = scmp.eq.s32.totalorder %s21, 0
      %p111 = por %p109, %p110
      %s113 = sadd.s32 %s112, 1
      %p116 = scmp.eq.s32.totalorder %s15, 1
      %p117 = scmp.ne.s32.totalorder %s112, %s114
      %p118 = scmp.eq.s32.totalorder %s15, 0
      %p119 = por %p117, %p118
      %p120 = scmp.ne.s32.totalorder %s112, %s114
      %p121 = scmp.eq.s32.totalorder %s20, 1
      %p122 = por %p120, %p121
      %p123 = scmp.ne.s32.totalorder %s114, %s115
      %p124 = scmp.eq.s32.totalorder %s20, 0
      %p125 = por %p123, %p124
      %p126 = scmp.ne.s32.totalorder %s114, %s115
      %p127 = scmp.eq.s32.totalorder %s21, 1
      %p128 = por %p126, %p127
      %p130 = scmp.ne.s32.totalorder %s115, %s129
      %p131 = scmp.eq.s32.totalorder %s21, 0
      %p132 = por %p130, %p131
      %s133 = ssub.s32 %s15, %s22
      %p134 = scmp.eq.s32.totalorder %s133, 0
      %s136 = sadd.s32 %s135, 1
      %s137 = scalar_select %p134, %s135, %s136
      %p140 = pneg %p134
      %p141 = scmp.eq.s32.totalorder %s15, 1
      %p142 = por %p140, %p141
      %p143 = scmp.ne.s32.totalorder %s135, %s138
      %p144 = scmp.eq.s32.totalorder %s15, 0
      %p145 = por %p143, %p144
      %p146 = scmp.ne.s32.totalorder %s135, %s138
      %p147 = scmp.eq.s32.totalorder %s20, 1
      %p148 = por %p146, %p147
      %p149 = scmp.ne.s32.totalorder %s138, %s139
      %p150 = scmp.eq.s32.totalorder %s20, 0
      %p151 = por %p149, %p150
      %p152 = scmp.ne.s32.totalorder %s138, %s139
      %p153 = scmp.eq.s32.totalorder %s21, 1
      %p154 = por %p152, %p153
      %p156 = scmp.ne.s32.totalorder %s139, %s155
      %p157 = scmp.eq.s32.totalorder %s21, 0
      %p158 = por %p156, %p157
      %p159 = scmp.le.s32.totalorder 1, %s15
      %p160 = scmp.lt.s32.totalorder %s15, 3
      %p161 = pnand %p159, %p160
      %p162 = pneg %p161
      // Predicated region
      $region9: #{tpu_custom_call.1} parent=5 // pred_check
        _
      $region10: #{tpu_custom_call.1} parent=5 // pred_check_branch
        %164 = sbr.rel (%p161) target = $region12
      $region11: #{tpu_custom_call.1} parent=5 // pred_region
        %s165 = ssub.s32 %s15, 1
        // Predicated region
        $region13: #{tpu_custom_call.1} parent=11 // pred_check
          %p166 = pneg %p62
        $region14: #{tpu_custom_call.1} parent=11 // pred_check_branch
          %168 = sbr.rel (%p166) target = $region16
        $region15: #{tpu_custom_call.1} parent=11 // pred_region
          _
        $region16: #{tpu_custom_call.1} parent=11 // pred_fallthru
          _
        // Predicated region
        $region17: #{tpu_custom_call.1} parent=11 // pred_check
          %p169 = pneg %p83
        $region18: #{tpu_custom_call.1} parent=11 // pred_check_branch
          %171 = sbr.rel (%p169) target = $region20
        $region19: #{tpu_custom_call.1} parent=11 // pred_region
          _
        $region20: #{tpu_custom_call.1} parent=11 // pred_fallthru
          _
        // Predicated region
        $region21: #{tpu_custom_call.1} parent=11 // pred_check
          %p172 = pneg %p104
        $region22: #{tpu_custom_call.1} parent=11 // pred_check_branch
          %174 = sbr.rel (%p172) target = $region24
        $region23: #{tpu_custom_call.1} parent=11 // pred_region
          %s176 = ssub.s32 2048, 2048
          %177 = vsyncadd [#allocation3], %s176
          %s178 = sshll.u32 [#allocation2], 4
          %s179 = int_to_ptr.vmem [resolvable:$true] %s178
          %184 = dma.hbm_to_vmem [thread:$0]  %s3, 2048, %s179, [#allocation3], 128, 128, 8
        $region24: #{tpu_custom_call.1} parent=11 // pred_fallthru
          _
        // Predicated region
        $region25: #{tpu_custom_call.1} parent=11 // pred_check
          %p185 = pneg %p125
        $region26: #{tpu_custom_call.1} parent=11 // pred_check_branch
          %187 = sbr.rel (%p185) target = $region28
        $region27: #{tpu_custom_call.1} parent=11 // pred_region
          _
        $region28: #{tpu_custom_call.1} parent=11 // pred_fallthru
          _
      $region12: #{tpu_custom_call.1} parent=5 // pred_fallthru
        _
      %p188 = scmp.lt.s32.totalorder %s15, 2
      // Predicated region
      $region29: #{tpu_custom_call.1} parent=5 // pred_check
        %p189 = pneg %p188
      $region30: #{tpu_custom_call.1} parent=5 // pred_check_branch
        %191 = sbr.rel (%p189) target = $region32
      $region31: #{tpu_custom_call.1} parent=5 // pred_region
        // Predicated region
        $region33: #{tpu_custom_call.1} parent=31 // pred_check
          %p192 = pneg %p35
        $region34: #{tpu_custom_call.1} parent=31 // pred_check_branch
          %194 = sbr.rel (%p192) target = $region36
        $region35: #{tpu_custom_call.1} parent=31 // pred_region
          %s195 = smul.u32 2, %s15
          %p196 = scmp.lt.s32.totalorder %s195, 3
          %s197 = scalar_select %p196, %s195, 3
          %s198 = smul.addr %s197, 8
          %s199 = scalar_lea.vmem %s0, %s198
          %s200 = smul.u32 2, %s15
        $region36: #{tpu_custom_call.1} parent=31 // pred_fallthru
          _
      $region32: #{tpu_custom_call.1} parent=5 // pred_fallthru
        _
      %p201 = scmp.le.s32.totalorder 1, %s15
      %p202 = scmp.lt.s32.totalorder %s15, 3
      %p203 = pnand %p201, %p202
      %p204 = pneg %p203
      // Predicated region
      $region37: #{tpu_custom_call.1} parent=5 // pred_check
        _
      $region38: #{tpu_custom_call.1} parent=5 // pred_check_branch
        %206 = sbr.rel (%p203) target = $region40
      $region39: #{tpu_custom_call.1} parent=5 // pred_region
        %s207 = ssub.s32 %s15, 1
        // Predicated region
        $region41: #{tpu_custom_call.1} parent=39 // pred_check
          %p208 = pneg %p104
        $region42: #{tpu_custom_call.1} parent=39 // pred_check_branch
          %210 = sbr.rel (%p208) target = $region44
        $region43: #{tpu_custom_call.1} parent=39 // pred_region
          %211 = dma.done [#allocation3], 2048
        $region44: #{tpu_custom_call.1} parent=39 // pred_fallthru
          _
        %s212 = smul.u32 2, %s20
        %p213 = scmp.lt.s32.totalorder %s212, 3
        %s214 = scalar_select %p213, %s212, 3
        %s215 = smul.addr %s214, 8
        %s216 = scalar_lea.vmem %s0, %s215
        %p217 = pneg %p41
        %p218 = pneg %p38
        %p219 = pneg %p62
        %p220 = pneg %p59
        %p221 = pneg %p83
        %p222 = pneg %p80
        %p223 = pneg %p104
        %p224 = pneg %p101
        %p225 = pneg %p125
        %p226 = pneg %p122
        %p227 = pneg %p151
        %p228 = pneg %p148
        %s229 = sand.u32 %s138, 1
        %s230 = scalar_lea.sflag [#allocation4], %s229
        %s231 = sand.u32 %s138, 1
        %s232 = smul.addr %s231, 16
        %s233 = scalar_lea.vmem [#allocation5], %s232
        %s234 = smul.u32 2, %s20
        %p235 = scmp.lt.s32.totalorder %s234, 3
        %s236 = scalar_select %p235, %s234, 3
        %s237 = smul.addr %s236, 8
        %s238 = scalar_lea.vmem %s0, %s237
        %s239 = smul.u32 2, %s20
        %s240 = smul.u32 2, %s20
        %v241 = vld [vmem:[%s1] sm:$0xff]
        %v242 = vld [vmem:[%s1 + $0x8] sm:$0xff]
        %v243 = vld [vmem:[#allocation2] sm:$0xff]
        %v244 = vld [vmem:[#allocation2 + $0x8] sm:$0xff]
        %v245 = vld [vmem:[#allocation2 + $0x10] sm:$0xff]
        %v246 = vld [vmem:[#allocation2 + $0x18] sm:$0xff]
        %v247 = vld [vmem:[#allocation2 + $0x20] sm:$0xff]
        %v248 = vld [vmem:[#allocation2 + $0x28] sm:$0xff]
        %v249 = vld [vmem:[#allocation2 + $0x30] sm:$0xff]
        %v250 = vld [vmem:[#allocation2 + $0x38] sm:$0xff]
        %v251 = vld [vmem:[#allocation2 + $0x40] sm:$0xff]
        %v252 = vld [vmem:[#allocation2 + $0x48] sm:$0xff]
        %v253 = vld [vmem:[#allocation2 + $0x50] sm:$0xff]
        %v254 = vld [vmem:[#allocation2 + $0x58] sm:$0xff]
        %v255 = vld [vmem:[#allocation2 + $0x60] sm:$0xff]
        %v256 = vld [vmem:[#allocation2 + $0x68] sm:$0xff]
        %v257 = vld [vmem:[#allocation2 + $0x70] sm:$0xff]
        %v258 = vld [vmem:[#allocation2 + $0x78] sm:$0xff]
        %v259 = vld [vmem:[%s2] sm:$0x1]
        %v260 = vld [vmem:[%s4] sm:$0x1]
        %v261 = vld [vmem:[%s238] sm:$0xff]
        %v262 = vld [vmem:[%s238 + $0x8] sm:$0xff]
        %v264 = vlaneseq
        %v265 = vshrl.u32 %v264, 7
        %v266 = vsub.s32 0, %v265
        %v267 = vrot.slane %v259, %v266
        %vm269 = vcmask 130048
        %v271 = vsel %vm269, %v261, 0
        %v274 = vsel %vm269, %v262, 0
        %276 = vmatprep.subr.mxu0 0.0
        %277 = vmatpush1.msra.mxu0 %v241
        %278 = vmatprep.subr.mxu0 0.0
        %279 = vmatpush1.msra.mxu0 %v242
        %280 = vmatprep.subr.mxu0 0.0
        %281 = vmatpush1.msra.mxu0 0.0
        %282 = vmatprep.subr.mxu0 0.0
        %283 = vmatpush1.msra.mxu0 0.0
        %284 = vmatprep.subr.mxu0 0.0
        %285 = vmatpush1.msra.mxu0 0.0
        %286 = vmatprep.subr.mxu0 0.0
        %287 = vmatpush1.msra.mxu0 0.0
        %288 = vmatprep.subr.mxu0 0.0
        %289 = vmatpush1.msra.mxu0 0.0
        %290 = vmatprep.subr.mxu0 0.0
        %291 = vmatpush1.msra.mxu0 0.0
        %292 = vmatprep.subr.mxu0 0.0
        %293 = vmatpush1.msra.mxu0 0.0
        %294 = vmatprep.subr.mxu0 0.0
        %295 = vmatpush1.msra.mxu0 0.0
        %296 = vmatprep.subr.mxu0 0.0
        %297 = vmatpush1.msra.mxu0 0.0
        %298 = vmatprep.subr.mxu0 0.0
        %299 = vmatpush1.msra.mxu0 0.0
        %300 = vmatprep.subr.mxu0 0.0
        %301 = vmatpush1.msra.mxu0 0.0
        %302 = vmatprep.subr.mxu0 0.0
        %303 = vmatpush1.msra.mxu0 0.0
        %304 = vmatprep.subr.mxu0 0.0
        %305 = vmatpush1.msra.mxu0 0.0
        %306 = vmatprep.subr.mxu0 0.0
        %307 = vmatpush1.msra.mxu0 0.0
        %308 = vmatprep.subr.mxu0 0.0
        %309 = vmatpush1.msra.mxu0 0.0
        %310 = vmatprep.subr.mxu0 0.0
        %311 = vmatpush1.msra.mxu0 0.0
        %312 = vmatprep.subr.mxu0 0.0
        %313 = vmatpush1.msra.mxu0 0.0
        %314 = vmatprep.subr.mxu0 0.0
        %315 = vmatpush1.msra.mxu0 0.0
        %316 = vmatprep.subr.mxu0 0.0
        %317 = vmatpush1.msra.mxu0 0.0
        %318 = vmatprep.subr.mxu0 0.0
        %319 = vmatpush1.msra.mxu0 0.0
        %320 = vmatprep.subr.mxu0 0.0
        %321 = vmatpush1.msra.mxu0 0.0
        %322 = vmatprep.subr.mxu0 0.0
        %323 = vmatpush1.msra.mxu0 0.0
        %324 = vmatprep.subr.mxu0 0.0
        %325 = vmatpush1.msra.mxu0 0.0
        %326 = vmatprep.subr.mxu0 0.0
        %327 = vmatpush1.msra.mxu0 0.0
        %328 = vmatprep.subr.mxu0 0.0
        %329 = vmatpush1.msra.mxu0 0.0
        %330 = vmatprep.subr.mxu0 0.0
        %331 = vmatpush1.msra.mxu0 0.0
        %332 = vmatprep.subr.mxu0 0.0
        %333 = vmatpush1.msra.mxu0 0.0
        %334 = vmatprep.subr.mxu0 0.0
        %335 = vmatpush1.msra.mxu0 0.0
        %336 = vmatprep.subr.mxu0 0.0
        %337 = vmatpush1.msra.mxu0 0.0
        %338 = vmatprep.subr.mxu0 0.0
        %339 = vmatpush1.msra.mxu0 0.0
        %340 = vmatprep.mubr.f32.mxu0 0.0
        %341 = vmatmul.mubr.f32.gmra.mrb[0].mxu0 %v271
        %v342 = vpop.f32.mrb[0].mxu0
        %v343 = vadd.f32 %v267, %v342
        %v344 = vpop.f32.mrb[0].mxu0
        %345 = vmatprep.mubr.f32.mxu0 0.0
        %346 = vmatmul.mubr.f32.gmra.mrb[0].mxu0 %v274
        %v347 = vpop.f32.mrb[0].mxu0
        %v348 = vadd.f32 %v267, %v347
        %v349 = vpop.f32.mrb[0].mxu0
        %350 = vdwg.mxu0
        %v351 = vmul.f32 %v343, 0.5
        %v352 = vmul.f32 %v348, 0.5
        %v353 = vmul.f32 %v343, 0.70710677
        %v354 = vmul.f32 %v348, 0.70710677
        %v355 = verf.f32.pop %v353
        %v356 = verf.f32.pop %v354
        %v357 = vadd.f32 %v355, 1.0
        %v358 = vadd.f32 %v356, 1.0
        %v359 = vmul.f32 %v351, %v357
        %v360 = vmul.f32 %v352, %v358
        %v362 = vlaneseq
        %v363 = vshrl.u32 %v362, 7
        %v364 = vsub.s32 0, %v363
        %v365 = vrot.slane %v260, %v364
        %367 = vmatprep.subr.mxu0 0.0
        %368 = vmatpush1.msra.mxu0 %v243
        %369 = vmatprep.subr.mxu0 0.0
        %370 = vmatpush1.msra.mxu0 %v244
        %371 = vmatprep.subr.mxu0 0.0
        %372 = vmatpush1.msra.mxu0 %v245
        %373 = vmatprep.subr.mxu0 0.0
        %374 = vmatpush1.msra.mxu0 %v246
        %375 = vmatprep.subr.mxu0 0.0
        %376 = vmatpush1.msra.mxu0 %v247
        %377 = vmatprep.subr.mxu0 0.0
        %378 = vmatpush1.msra.mxu0 %v248
        %379 = vmatprep.subr.mxu0 0.0
        %380 = vmatpush1.msra.mxu0 %v249
        %381 = vmatprep.subr.mxu0 0.0
        %382 = vmatpush1.msra.mxu0 %v250
        %383 = vmatprep.subr.mxu0 0.0
        %384 = vmatpush1.msra.mxu0 %v251
        %385 = vmatprep.subr.mxu0 0.0
        %386 = vmatpush1.msra.mxu0 %v252
        %387 = vmatprep.subr.mxu0 0.0
        %388 = vmatpush1.msra.mxu0 %v253
        %389 = vmatprep.subr.mxu0 0.0
        %390 = vmatpush1.msra.mxu0 %v254
        %391 = vmatprep.subr.mxu0 0.0
        %392 = vmatpush1.msra.mxu0 %v255
        %393 = vmatprep.subr.mxu0 0.0
        %394 = vmatpush1.msra.mxu0 %v256
        %395 = vmatprep.subr.mxu0 0.0
        %396 = vmatpush1.msra.mxu0 %v257
        %397 = vmatprep.subr.mxu0 0.0
        %398 = vmatpush1.msra.mxu0 %v258
        %399 = vmatprep.subr.mxu0 0.0
        %400 = vmatpush1.msra.mxu0 0.0
        %401 = vmatprep.subr.mxu0 0.0
        %402 = vmatpush1.msra.mxu0 0.0
        %403 = vmatprep.subr.mxu0 0.0
        %404 = vmatpush1.msra.mxu0 0.0
        %405 = vmatprep.subr.mxu0 0.0
        %406 = vmatpush1.msra.mxu0 0.0
        %407 = vmatprep.subr.mxu0 0.0
        %408 = vmatpush1.msra.mxu0 0.0
        %409 = vmatprep.subr.mxu0 0.0
        %410 = vmatpush1.msra.mxu0 0.0
        %411 = vmatprep.subr.mxu0 0.0
        %412 = vmatpush1.msra.mxu0 0.0
        %413 = vmatprep.subr.mxu0 0.0
        %414 = vmatpush1.msra.mxu0 0.0
        %415 = vmatprep.subr.mxu0 0.0
        %416 = vmatpush1.msra.mxu0 0.0
        %417 = vmatprep.subr.mxu0 0.0
        %418 = vmatpush1.msra.mxu0 0.0
        %419 = vmatprep.subr.mxu0 0.0
        %420 = vmatpush1.msra.mxu0 0.0
        %421 = vmatprep.subr.mxu0 0.0
        %422 = vmatpush1.msra.mxu0 0.0
        %423 = vmatprep.subr.mxu0 0.0
        %424 = vmatpush1.msra.mxu0 0.0
        %425 = vmatprep.subr.mxu0 0.0
        %426 = vmatpush1.msra.mxu0 0.0
        %427 = vmatprep.subr.mxu0 0.0
        %428 = vmatpush1.msra.mxu0 0.0
        %429 = vmatprep.subr.mxu0 0.0
        %430 = vmatpush1.msra.mxu0 0.0
        %431 = vmatprep.mubr.f32.mxu0 0.0
        %432 = vmatmul.mubr.f32.gmra.mrb[0].mxu0 %v359
        %v433 = vpop.f32.mrb[0].mxu0
        %v434 = vadd.f32 %v365, %v433
        %v435 = vpop.f32.mrb[0].mxu0
        %436 = vmatprep.mubr.f32.mxu0 0.0
        %437 = vmatmul.mubr.f32.gmra.mrb[0].mxu0 %v360
        %v438 = vpop.f32.mrb[0].mxu0
        %v439 = vadd.f32 %v365, %v438
        %v440 = vpop.f32.mrb[0].mxu0
        %441 = vdwg.mxu0
        %442 = vst [vmem:[%s233] sm:$0xff] %v434
        %443 = vst [vmem:[%s233 + $0x8] sm:$0xff] %v439
        %s444 = sand.u32 %s138, 1
        %s445 = scalar_lea.sflag [#allocation4], %s444
        %s446 = sand.u32 %s138, 1
        %s447 = smul.addr %s446, 16
        %s448 = scalar_lea.vmem [#allocation5], %s447
        // Predicated region
        $region45: #{tpu_custom_call.1} parent=39 // pred_check
          %p449 = pneg %p148
        $region46: #{tpu_custom_call.1} parent=39 // pred_check_branch
          %451 = sbr.rel (%p449) target = $region48
        $region47: #{tpu_custom_call.1} parent=39 // pred_region
          %s452 = smul.u32 2, %s20
          %s454 = ssub.s32 256, 256
          %455 = vsyncadd %s445, %s454
          %s456 = smul.addr %s452, 128
          %s457 = scalar_lea.hbm %s5, %s456
          %s458 = sshll.u32 %s448, 4
          %s459 = int_to_ptr.vmem [resolvable:$true] %s458
          %464 = dma.vmem_to_hbm [thread:$0]  %s459, 256, %s457, %s445, 128, 128, 8
        $region48: #{tpu_custom_call.1} parent=39 // pred_fallthru
          _
      $region40: #{tpu_custom_call.1} parent=5 // pred_fallthru
        _
      %p465 = scmp.le.s32.totalorder 2, %s15
      // Predicated region
      $region49: #{tpu_custom_call.1} parent=5 // pred_check
        %p466 = pneg %p465
      $region50: #{tpu_custom_call.1} parent=5 // pred_check_branch
        %468 = sbr.rel (%p466) target = $region52
      $region51: #{tpu_custom_call.1} parent=5 // pred_region
        %s469 = ssub.s32 %s15, 2
        // Predicated region
        $region53: #{tpu_custom_call.1} parent=51 // pred_check
          %p470 = pneg %p154
        $region54: #{tpu_custom_call.1} parent=51 // pred_check_branch
          %472 = sbr.rel (%p470) target = $region56
        $region55: #{tpu_custom_call.1} parent=51 // pred_region
          %s473 = sand.u32 %s139, 1
          %s474 = scalar_lea.sflag [#allocation4], %s473
          %s475 = sand.u32 %s139, 1
          %s476 = smul.addr %s475, 16
          %s477 = scalar_lea.vmem [#allocation5], %s476
          %478 = dma.done %s474, 256
        $region56: #{tpu_custom_call.1} parent=51 // pred_fallthru
          _
      $region52: #{tpu_custom_call.1} parent=5 // pred_fallthru
        _
    $region6: #{tpu_custom_call.1} parent=1 // loop_footer
      %s19 = sadd.s32 1, %s15
    $region7: #{tpu_custom_call.1} parent=1 // loop_footer_branch
      %14 = sbr.rel target = $region3
    $region8: #{tpu_custom_call.1} parent=1 // loop_exit
      _
    %479 = vsyncpa [#allocation3], 1
    %s480 = scalar_lea.sflag [#allocation3], 1
    %481 = vsyncpa %s480, 1
    %482 = vsyncpa [#allocation4], 1
    %s483 = scalar_lea.sflag [#allocation4], 1
    %484 = vsyncpa %s483, 1

</llo_original>
